<compile_context>
chip_gen: v5e
topology: v5e:2x2
jax: 0.10.0
libtpu: 0.0.40
codegen_flags: <defaults>
</compile_context>

<pallas_src>
import functools
from typing import Sequence, List, Optional

import numpy as np
import jax
import jax.numpy as jnp
from jax.experimental import pallas as pl
from jax.experimental.pallas import tpu as pltpu


LANE = 128     # last-dim tile multiple (lane width)
SUBLANE = 16   # row-dim tile multiple (bf16 sublane packing)

# Note for v7x: its 64 MiB VMEM is still far above what these tile caps
# (tm<=256, tn/tk/tv<=512 in bf16) can use, so the same constants are safe
# across v5e / v6e / v7x; the 512 caps are 256-aligned for the v6e/v7x MXU.
_MAX_TM = 256
_MAX_TN = 512
_MAX_TK = 512
_VMEM_LIMIT = 64 * 1024 * 1024


def _round_up(x: int, m: int) -> int:
    return ((x + m - 1) // m) * m


def _next_pow2(x: int) -> int:
    return 1 << max(0, (x - 1).bit_length())


def _pad2d(a, rows, cols):
    r, c = a.shape
    if r == rows and c == cols:
        return a
    return jnp.pad(a, ((0, rows - r), (0, cols - c)))


# ----------------------------- Pallas kernels ------------------------------

def _head_kernel(x_ref, wt_ref, b_ref, o_ref, acc_ref):
    # x: (tm, tk) bf16, wt: (tk, tn) bf16, b: (1, tn) f32 -> o: (tm, tn) f32
    k = pl.program_id(2)

    @pl.when(k == 0)
    def _():
        acc_ref[...] = jnp.zeros_like(acc_ref)

    acc_ref[...] += jnp.dot(x_ref[...], wt_ref[...],
                            preferred_element_type=jnp.float32)

    @pl.when(k == pl.num_programs(2) - 1)
    def _():
        o_ref[...] = (acc_ref[...] + b_ref[...]).astype(o_ref.dtype)


def _tail_kernel(x_ref, w1t_ref, w2t_ref, o_ref, h_ref):
    # x: (tm, Kp) bf16, w1t: (Kp, Hp) bf16, w2t: (Hp, tv) bf16 -> o: (tm, tv) f32
    # h = x @ W1^T is computed once per row tile (first V tile) and cached.
    @pl.when(pl.program_id(1) == 0)
    def _():
        h_ref[...] = jnp.dot(x_ref[...], w1t_ref[...],
                             preferred_element_type=jnp.float32
                             ).astype(h_ref.dtype)

    o_ref[...] = jnp.dot(h_ref[...], w2t_ref[...],
                         preferred_element_type=jnp.float32
                         ).astype(o_ref.dtype)


# ------------------------------ Pallas callers ------------------------------

@functools.partial(jax.jit, static_argnames=("max_tm", "max_tn", "max_tk"))
def head_forward(x_bf16, w_head_t, b_head, *,
                 max_tm=_MAX_TM, max_tn=_MAX_TN, max_tk=_MAX_TK):
    m, k = x_bf16.shape
    o = w_head_t.shape[1]

    tm = min(max_tm, _round_up(m, SUBLANE))
    tn = min(max_tn, _round_up(o, LANE))
    tk = min(max_tk, _round_up(k, LANE))
    mp, kp, op = _round_up(m, tm), _round_up(k, tk), _round_up(o, tn)

    xp = _pad2d(x_bf16, mp, kp)
    wp = _pad2d(w_head_t, kp, op)
    bp = _pad2d(b_head, 1, op)

    grid = (mp // tm, op // tn, kp // tk)
    flops = 2 * mp * kp * op
    bytes_accessed = xp.size * 2 + wp.size * 2 + bp.size * 4 + mp * op * 4

    out = pl.pallas_call(
        _head_kernel,
        out_shape=jax.ShapeDtypeStruct((mp, op), jnp.float32),
        grid_spec=pltpu.PrefetchScalarGridSpec(
            num_scalar_prefetch=0,
            grid=grid,
            in_specs=[
                pl.BlockSpec((tm, tk), lambda i, j, kk: (i, kk)),
                pl.BlockSpec((tk, tn), lambda i, j, kk: (kk, j)),
                pl.BlockSpec((1, tn), lambda i, j, kk: (0, j)),
            ],
            out_specs=pl.BlockSpec((tm, tn), lambda i, j, kk: (i, j)),
            scratch_shapes=[pltpu.VMEM((tm, tn), jnp.float32)],
        ),
        compiler_params=pltpu.CompilerParams(
            dimension_semantics=("parallel", "parallel", "arbitrary"),
            vmem_limit_bytes=_VMEM_LIMIT,
        ),
        cost_estimate=pl.CostEstimate(
            flops=flops, transcendentals=0, bytes_accessed=bytes_accessed),
    )(xp, wp, bp)
    return out[:m, :o]


@functools.partial(jax.jit, static_argnames=("max_tm", "max_tv"))
def tail_forward(x_bf16, w1_t, w2_t, *, max_tm=_MAX_TM, max_tv=_MAX_TN):
    m, k = x_bf16.shape
    h = w1_t.shape[1]
    v = w2_t.shape[1]

    tm = min(max_tm, _round_up(m, SUBLANE))
    tv = min(max_tv, _round_up(v, LANE))
    kp = _round_up(k, LANE)
    hp = _round_up(h, LANE)
    mp = _round_up(m, tm)
    vp = _round_up(v, tv)

    xp = _pad2d(x_bf16, mp, kp)
    w1p = _pad2d(w1_t, kp, hp)
    w2p = _pad2d(w2_t, hp, vp)

    grid = (mp // tm, vp // tv)
    flops = 2 * mp * kp * hp + 2 * mp * hp * vp
    bytes_accessed = xp.size * 2 + w1p.size * 2 + w2p.size * 2 + mp * vp * 4

    out = pl.pallas_call(
        _tail_kernel,
        out_shape=jax.ShapeDtypeStruct((mp, vp), jnp.float32),
        grid_spec=pltpu.PrefetchScalarGridSpec(
            num_scalar_prefetch=0,
            grid=grid,
            in_specs=[
                pl.BlockSpec((tm, kp), lambda i, j: (i, 0)),
                pl.BlockSpec((kp, hp), lambda i, j: (0, 0)),   # W1^T resident
                pl.BlockSpec((hp, tv), lambda i, j: (0, j)),   # W2^T tiled in V
            ],
            out_specs=pl.BlockSpec((tm, tv), lambda i, j: (i, j)),
            scratch_shapes=[pltpu.VMEM((tm, hp), jnp.bfloat16)],
        ),
        compiler_params=pltpu.CompilerParams(
            dimension_semantics=("parallel", "arbitrary"),
            vmem_limit_bytes=_VMEM_LIMIT,
        ),
        cost_estimate=pl.CostEstimate(
            flops=flops, transcendentals=0, bytes_accessed=bytes_accessed),
    )(xp, w1p, w2p)
    return out[:m, :v]


# ------------------------------ Module wrapper ------------------------------

class AdaptiveSoftmax:
    """JAX/Pallas port of the PyTorch AdaptiveSoftmax forward pass."""

    def __init__(self, input_size: int, cutoffs: Sequence[int],
                 scale_down: int = 4, init: float = 0.1, seed: int = 0):
        self.input_size = input_size
        self.cutoffs = list(cutoffs)
        self.output_size = cutoffs[0] + len(cutoffs) - 1

        key = jax.random.PRNGKey(seed)
        k_hw, k_hb, *k_tails = jax.random.split(key, 2 + 2 * (len(cutoffs) - 1))

        # head Linear(D -> O) with bias; weight stored pre-transposed (D, O),
        # cast to bf16 for the MXU; bias kept f32 (added in f32 accumulator).
        self.w_head_t = jax.random.uniform(
            k_hw, (input_size, self.output_size), jnp.float32, -init, init
        ).astype(jnp.bfloat16)
        self.b_head = jax.random.uniform(
            k_hb, (1, self.output_size), jnp.float32, -init, init)

        hidden = input_size // scale_down
        self.tails = []
        for i in range(len(cutoffs) - 1):
            v = cutoffs[i + 1] - cutoffs[i]
            w1_t = jax.random.uniform(
                k_tails[2 * i], (input_size, hidden), jnp.float32, -init, init
            ).astype(jnp.bfloat16)
            w2_t = jax.random.uniform(
                k_tails[2 * i + 1], (hidden, v), jnp.float32, -init, init
            ).astype(jnp.bfloat16)
            self.tails.append((w1_t, w2_t))

        self.id: List[Optional[np.ndarray]] = []

    def set_target(self, target) -> None:
        # Host-side (data-dependent shapes): mirrors torch's mask.nonzero().
        target = np.asarray(target)
        self.id = []
        for i in range(len(self.cutoffs) - 1):
            mask = (target >= self.cutoffs[i]) & (target < self.cutoffs[i + 1])
            if mask.sum() > 0:
                self.id.append(np.nonzero(mask)[0].astype(np.int32))
            else:
                self.id.append(None)

    def forward(self, inp: jnp.ndarray):
        assert inp.ndim == 2
        x_bf = inp.astype(jnp.bfloat16)
        output = [head_forward(x_bf, self.w_head_t, self.b_head)]
        for i in range(len(self.id)):
            if self.id[i] is not None:
                idx = self.id[i]
                n_sel = int(idx.shape[0])
                # Bucket the selected-row count -> static kernel shapes.
                n_bucket = max(SUBLANE, _next_pow2(n_sel))
                idx_pad = np.zeros((n_bucket,), np.int32)
                idx_pad[:n_sel] = idx
                sel = jnp.take(x_bf, jnp.asarray(idx_pad), axis=0)
                w1_t, w2_t = self.tails[i]
                output.append(tail_forward(sel, w1_t, w2_t)[:n_sel])
            else:
                output.append(None)
        return output

    # Host-side numpy reference (mirrors the bf16 weight/activation casts).
    def forward_ref(self, inp: jnp.ndarray):
        x = np.asarray(inp.astype(jnp.bfloat16)).astype(np.float32)
        wh = np.asarray(self.w_head_t).astype(np.float32)
        bh = np.asarray(self.b_head).astype(np.float32)
        output = [x @ wh + bh]
        for i in range(len(self.id)):
            if self.id[i] is not None:
                sel = x[self.id[i]]
                w1 = np.asarray(self.tails[i][0]).astype(np.float32)
                w2 = np.asarray(self.tails[i][1]).astype(np.float32)
                h = sel @ w1
                # kernel keeps h in bf16 scratch; mirror that rounding here.
                h = np.asarray(jnp.asarray(h, jnp.float32).astype(jnp.bfloat16)
                               ).astype(np.float32)
                output.append(h @ w2)
            else:
                output.append(None)
        return output


# ----------------------------------- main -----------------------------------

if __name__ == "__main__":
    input_size = 32
    cutoffs = [8, 12, 16]
    batch = 8

    key = jax.random.PRNGKey(0)
    k_x, _ = jax.random.split(key)
    x = jax.random.normal(k_x, (batch, input_size), jnp.float32)
    # Targets spanning head + both tail clusters (deterministic).
    target = np.array([0, 3, 8, 9, 11, 12, 15, 5], dtype=np.int32)

    model = AdaptiveSoftmax(input_size, cutoffs, scale_down=4, seed=0)
    model.set_target(target)

    outs = model.forward(x)
    refs = model.forward_ref(x)

    for o in outs:
        if o is not None:
            jax.block_until_ready(o)

    for o, r in zip(outs, refs):
        if o is None:
            assert r is None
            continue
        np.testing.assert_allclose(np.asarray(o), r, rtol=5e-3, atol=5e-3)

    print("KERNEL_OK")
</pallas_src>

<mosaic_0001>
module attributes {stable_mosaic.version = 11 : i64} {
  func.func @_head_kernel(%arg0: i32, %arg1: i32, %arg2: i32, %arg3: memref<16x128xbf16, #tpu.memory_space<vmem>>, %arg4: memref<128x128xbf16, #tpu.memory_space<vmem>>, %arg5: memref<1x128xf32, #tpu.memory_space<vmem>>, %arg6: memref<16x128xf32, #tpu.memory_space<vmem>>, %arg7: memref<16x128xf32, #tpu.memory_space<vmem>>) attributes {dimension_semantics = [#tpu.dimension_semantics<parallel>, #tpu.dimension_semantics<parallel>, #tpu.dimension_semantics<arbitrary>], iteration_bounds = array<i64: 1, 1, 1>, scalar_prefetch = 0 : i64, scratch_operands = 1 : i64, tpu.core_type = #tpu.core_type<tc>, window_params = [{transform_indices = @transform_0, window_bounds = array<i64: 16, 128>}, {transform_indices = @transform_1, window_bounds = array<i64: 128, 128>}, {transform_indices = @transform_2, window_bounds = array<i64: 1, 128>}, {transform_indices = @transform_3, window_bounds = array<i64: 16, 128>}]} {
    %c0_i32 = arith.constant 0 : i32
    %0 = arith.cmpi eq, %arg2, %c0_i32 : i32
    %1 = arith.extui %0 : i1 to i32
    %c0_i32_0 = arith.constant 0 : i32
    %2 = arith.cmpi ne, %1, %c0_i32_0 : i32
    scf.if %2 {
      %cst_10 = arith.constant 0.000000e+00 : f32
      %12 = vector.broadcast %cst_10 : f32 to vector<16x128xf32>
      %c0_11 = arith.constant 0 : index
      %c0_12 = arith.constant 0 : index
      %13 = vector.load %arg7[%c0_11, %c0_12] : memref<16x128xf32, #tpu.memory_space<vmem>>, vector<16x128xf32>
      tpu.vector_store %arg7[%c0_11, %c0_12], %12 {strides = array<i32>} : memref<16x128xf32, #tpu.memory_space<vmem>>, vector<16x128xf32>,
    } else {
    }
    %c0 = arith.constant 0 : index
    %c0_1 = arith.constant 0 : index
    %3 = vector.load %arg7[%c0, %c0_1] : memref<16x128xf32, #tpu.memory_space<vmem>>, vector<16x128xf32>
    %c0_2 = arith.constant 0 : index
    %c0_3 = arith.constant 0 : index
    %4 = vector.load %arg3[%c0_2, %c0_3] : memref<16x128xbf16, #tpu.memory_space<vmem>>, vector<16x128xbf16>
    %c0_4 = arith.constant 0 : index
    %c0_5 = arith.constant 0 : index
    %5 = vector.load %arg4[%c0_4, %c0_5] : memref<128x128xbf16, #tpu.memory_space<vmem>>, vector<128x128xbf16>
    %cst = arith.constant dense<0.000000e+00> : vector<16x128xf32>
    %6 = tpu.matmul %4, %5, %cst {dimension_numbers = #tpu.dot_dimension_numbers<[1], [0], [0], [1], [0, 0, 1, 1], [], []>} : vector<16x128xbf16>, vector<128x128xbf16>, vector<16x128xf32> -> vector<16x128xf32>
    %7 = arith.addf %3, %6 : vector<16x128xf32>
    %c0_6 = arith.constant 0 : index
    %c0_7 = arith.constant 0 : index
    %8 = vector.load %arg7[%c0_6, %c0_7] : memref<16x128xf32, #tpu.memory_space<vmem>>, vector<16x128xf32>
    tpu.vector_store %arg7[%c0_6, %c0_7], %7 {strides = array<i32>} : memref<16x128xf32, #tpu.memory_space<vmem>>, vector<16x128xf32>,
    %c0_i32_8 = arith.constant 0 : i32
    %9 = arith.cmpi eq, %arg2, %c0_i32_8 : i32
    %10 = arith.extui %9 : i1 to i32
    %c0_i32_9 = arith.constant 0 : i32
    %11 = arith.cmpi ne, %10, %c0_i32_9 : i32
    scf.if %11 {
      %c0_10 = arith.constant 0 : index
      %c0_11 = arith.constant 0 : index
      %12 = vector.load %arg7[%c0_10, %c0_11] : memref<16x128xf32, #tpu.memory_space<vmem>>, vector<16x128xf32>
      %c0_12 = arith.constant 0 : index
      %c0_13 = arith.constant 0 : index
      %13 = vector.load %arg5[%c0_12, %c0_13] : memref<1x128xf32, #tpu.memory_space<vmem>>, vector<1x128xf32>
      %14 = vector.broadcast %13 : vector<1x128xf32> to vector<16x128xf32>
      %15 = arith.addf %12, %14 : vector<16x128xf32>
      %c0_14 = arith.constant 0 : index
      %c0_15 = arith.constant 0 : index
      %16 = vector.load %arg6[%c0_14, %c0_15] : memref<16x128xf32, #tpu.memory_space<vmem>>, vector<16x128xf32>
      tpu.vector_store %arg6[%c0_14, %c0_15], %15 {strides = array<i32>} : memref<16x128xf32, #tpu.memory_space<vmem>>, vector<16x128xf32>,
    } else {
    }
    return
  }
  func.func @transform_0(%arg0: i32, %arg1: i32, %arg2: i32) -> (i32, i32) {
    %c0_i32 = arith.constant 0 : i32
    return %arg0, %arg2 : i32, i32
  }
  func.func @transform_1(%arg0: i32, %arg1: i32, %arg2: i32) -> (i32, i32) {
    %c0_i32 = arith.constant 0 : i32
    return %arg2, %arg1 : i32, i32
  }
  func.func @transform_2(%arg0: i32, %arg1: i32, %arg2: i32) -> (i32, i32) {
    %c0_i32 = arith.constant 0 : i32
    %c0_i32_0 = arith.constant 0 : i32
    return %c0_i32, %arg1 : i32, i32
  }
  func.func @transform_3(%arg0: i32, %arg1: i32, %arg2: i32) -> (i32, i32) {
    %c0_i32 = arith.constant 0 : i32
    return %arg0, %arg1 : i32, i32
  }
}

</mosaic_0001>

<llo_original>
// kernel: head_forward.1
$region0: #{head_forward.1}
  #allocation0 [shape = 'u32[]', space=smem, size = 0x4, offset = 0x4, fixed_abs, tag = 'smem constant byte address 0x4 - core index']
  #allocation1 [shape = 'u32[72,128]{1,0:T(1,128)}', space=vmem, size = 0x9000, scoped, tag = 'internal scratch']
  #allocation2 [shape = 'f32[16,128]{1,0:T(8,128)}', space=vmem, size = 0x2000, scoped, tag = 'scratch operand']
  %s0 = inlined_call_operand.vmem [shape: bf16[16,128], index: 0, kind: input, shape index: {}]
  %s1 = inlined_call_operand.vmem [shape: bf16[128,128], index: 1, kind: input, shape index: {}]
  %s2 = inlined_call_operand.vmem [shape: f32[1,128], index: 2, kind: input, shape index: {}]
  %s3 = inlined_call_operand.vmem [shape: f32[16,128], index: 3, kind: output, shape index: {}]
  %s4 = sld [smem:[#allocation0]]
  $region30: #{head_forward.1} parent=0
    _
  %s6 = ssub.s32 1, %s4
  %s7 = scalar_select 0, %s6, %s4
  // Predicated region
  $region2: #{head_forward.1} parent=0 // pred_check
    _
  $region3: #{head_forward.1} parent=0 // pred_check_branch
    %9 = sbr.rel (0) target = $region5
  $region4: #{head_forward.1} parent=0 // pred_region
    _
  $region5: #{head_forward.1} parent=0 // pred_fallthru
    _
  // Predicated region
  $region6: #{head_forward.1} parent=0 // pred_check
    _
  $region7: #{head_forward.1} parent=0 // pred_check_branch
    %11 = sbr.rel (0) target = $region9
  $region8: #{head_forward.1} parent=0 // pred_region
    _
  $region9: #{head_forward.1} parent=0 // pred_fallthru
    _
  // Predicated region
  $region10: #{head_forward.1} parent=0 // pred_check
    _
  $region11: #{head_forward.1} parent=0 // pred_check_branch
    %13 = sbr.rel (0) target = $region13
  $region12: #{head_forward.1} parent=0 // pred_region
    _
  $region13: #{head_forward.1} parent=0 // pred_fallthru
    _
  %p14 = scmp.eq.s32.totalorder 0, 0
  // Predicated region
  $region14: #{head_forward.1} parent=0 // pred_check
    %p15 = pneg %p14
  $region15: #{head_forward.1} parent=0 // pred_check_branch
    %17 = sbr.rel (%p15) target = $region17
  $region16: #{head_forward.1} parent=0 // pred_region
    %18 = vst [vmem:[#allocation2] sm:$0xff] 0.0
    %19 = vst [vmem:[#allocation2 + $0x8] sm:$0xff] 0.0
  $region17: #{head_forward.1} parent=0 // pred_fallthru
    _
  %v20 = vld [vmem:[#allocation2] sm:$0xff]
  %v21 = vld [vmem:[#allocation2 + $0x8] sm:$0xff]
  %v22 = vld [vmem:[%s0] sm:$0xf]
  %v23 = vld [vmem:[%s0 + $0x4] sm:$0xf]
  %v24 = vld [vmem:[%s1] sm:$0xf]
  %v25 = vld [vmem:[%s1 + $0x4] sm:$0xf]
  %v26 = vld [vmem:[%s1 + $0x8] sm:$0xf]
  %v27 = vld [vmem:[%s1 + $0xc] sm:$0xf]
  %v28 = vld [vmem:[%s1 + $0x10] sm:$0xf]
  %v29 = vld [vmem:[%s1 + $0x14] sm:$0xf]
  %v30 = vld [vmem:[%s1 + $0x18] sm:$0xf]
  %v31 = vld [vmem:[%s1 + $0x1c] sm:$0xf]
  %v32 = vld [vmem:[%s1 + $0x20] sm:$0xf]
  %v33 = vld [vmem:[%s1 + $0x24] sm:$0xf]
  %v34 = vld [vmem:[%s1 + $0x28] sm:$0xf]
  %v35 = vld [vmem:[%s1 + $0x2c] sm:$0xf]
  %v36 = vld [vmem:[%s1 + $0x30] sm:$0xf]
  %v37 = vld [vmem:[%s1 + $0x34] sm:$0xf]
  %v38 = vld [vmem:[%s1 + $0x38] sm:$0xf]
  %v39 = vld [vmem:[%s1 + $0x3c] sm:$0xf]
  %v42 = vunpack.c.l.b16 %v22
  %v43 = vunpack.c.l.b16 %v23
  %v44 = vpack.c.b16 %v43, %v42
  %v62 = vunpack.c.l.b16 %v24
  %v63 = vunpack.c.l.b16 %v25
  %v64 = vunpack.c.l.b16 %v26
  %v65 = vunpack.c.l.b16 %v27
  %v66 = vunpack.c.l.b16 %v28
  %v67 = vunpack.c.l.b16 %v29
  %v68 = vunpack.c.l.b16 %v30
  %v69 = vunpack.c.l.b16 %v31
  %v70 = vunpack.c.l.b16 %v32
  %v71 = vunpack.c.l.b16 %v33
  %v72 = vunpack.c.l.b16 %v34
  %v73 = vunpack.c.l.b16 %v35
  %v74 = vunpack.c.l.b16 %v36
  %v75 = vunpack.c.l.b16 %v37
  %v76 = vunpack.c.l.b16 %v38
  %v77 = vunpack.c.l.b16 %v39
  %v78 = vpack.c.b16 %v63, %v62
  %v79 = vpack.c.b16 %v65, %v64
  %v80 = vpack.c.b16 %v67, %v66
  %v81 = vpack.c.b16 %v69, %v68
  %v82 = vpack.c.b16 %v71, %v70
  %v83 = vpack.c.b16 %v73, %v72
  %v84 = vpack.c.b16 %v75, %v74
  %v85 = vpack.c.b16 %v77, %v76
  %94 = vmatpush.bf16.msra.mxu0 %v85
  %95 = vmatpush.bf16.msra.mxu0 %v84
  %96 = vmatpush.bf16.msra.mxu0 %v83
  %97 = vmatpush.bf16.msra.mxu0 %v82
  %98 = vmatpush.bf16.msra.mxu0 %v81
  %99 = vmatpush.bf16.msra.mxu0 %v80
  %100 = vmatpush.bf16.msra.mxu0 %v79
  %101 = vmatpush.bf16.msra.mxu0 %v78
  %102 = vmatmul.bf16.gmra.mxu0 %v44
  %v103 = vpop.f32.mrf.mxu0
  %v104 = vadd.f32 0.0, %v103
  %v105 = vpop.f32.mrf.mxu0
  %v106 = vadd.f32 0.0, %v105
  %107 = vdwg.mxu0
  %v108 = vadd.f32 %v20, %v104
  %v109 = vadd.f32 %v21, %v106
  %110 = vst [vmem:[#allocation2] sm:$0xff] %v108
  %111 = vst [vmem:[#allocation2 + $0x8] sm:$0xff] %v109
  // Predicated region
  $region18: #{head_forward.1} parent=0 // pred_check
    %p112 = pneg %p14
  $region19: #{head_forward.1} parent=0 // pred_check_branch
    %114 = sbr.rel (%p112) target = $region21
  $region20: #{head_forward.1} parent=0 // pred_region
    %v115 = vld [vmem:[#allocation2] sm:$0xff]
    %v116 = vld [vmem:[#allocation2 + $0x8] sm:$0xff]
    %v117 = vld [vmem:[%s2] sm:$0x1]
    %v119 = vperm.slane %v117, 0
    %v121 = vadd.f32 %v115, %v119
    %v122 = vadd.f32 %v116, %v119
    %123 = vst [vmem:[%s3] sm:$0xff] %v121
    %124 = vst [vmem:[%s3 + $0x8] sm:$0xff] %v122
  $region21: #{head_forward.1} parent=0 // pred_fallthru
    _
  // Predicated region
  $region22: #{head_forward.1} parent=0 // pred_check
    _
  $region23: #{head_forward.1} parent=0 // pred_check_branch
    %126 = sbr.rel (0) target = $region25
  $region24: #{head_forward.1} parent=0 // pred_region
    _
  $region25: #{head_forward.1} parent=0 // pred_fallthru
    _
  // Predicated region
  $region26: #{head_forward.1} parent=0 // pred_check
    _
  $region27: #{head_forward.1} parent=0 // pred_check_branch
    %128 = sbr.rel (0) target = $region29
  $region28: #{head_forward.1} parent=0 // pred_region
    _
  $region29: #{head_forward.1} parent=0 // pred_fallthru
    _

</llo_original>
